<compile_context>
chip_gen: v5e
topology: v5e:2x2
jax: 0.10.0
libtpu: 0.0.40
codegen_flags: <defaults>
</compile_context>

<pallas_src>
import jax
import jax.numpy as jnp
from jax.experimental import pallas as pl
from jax.experimental.pallas import tpu as pltpu


def _round_up(x, m):
    return ((x + m - 1) // m) * m


def make_offsets(H, L, O):
    """Column offsets inside the packed weight / bias slabs.

    Segments that feed the MXU start on 128-lane boundaries so every ref slice
    stays inside a single lane tile (cheap, robust loads)."""
    WHH = 0                              # (H,3H) whh  | (1,3H) bhh
    AWH = 3 * H                          # (H,L)  aw_h | (1,L)  ab
    WIH = _round_up(AWH + L, 128)        # (H,3H) wih  | (1,3H) bih
    CWA = _round_up(WIH + 3 * H, 128)    # (H,H)  cw_a | (1,H)  cb
    OUTW = _round_up(CWA + H, 128)       # (H,O)  out_w| (1,O)  ob
    AWX = OUTW + O                       # (1,L)  aw_x   (bias slab only)
    CWX = AWX + L                        # (1,H)  cw_x   (bias slab only)
    COLS = _round_up(max(OUTW + O, CWX + H), 128)
    return dict(WHH=WHH, AWH=AWH, WIH=WIH, CWA=CWA, OUTW=OUTW,
                AWX=AWX, CWX=CWX, COLS=COLS)


def make_kernel(H, L, O):
    off = make_offsets(H, L, O)
    WHH, AWH, WIH, CWA, OUTW, AWX, CWX = (
        off["WHH"], off["AWH"], off["WIH"], off["CWA"],
        off["OUTW"], off["AWX"], off["CWX"])
    H3 = 3 * H

    def kernel(x_ref, h_ref, enc_ref, w_ref, b_ref, o_ref):
        x = x_ref[0, 0]                      # scalar input (SMEM)
        h = h_ref[...]                       # (1, H)
        b = b_ref[...]                       # (1, COLS) packed bias/row-vector slab

        # ---- ONE MXU call for everything that multiplies h: [whh_r|whh_z|whh_n|aw_h]
        hseg = jnp.dot(h, w_ref[:, WHH:AWH + L],
                       preferred_element_type=jnp.float32)          # (1, 3H+L)
        gh = hseg[:, 0:H3] + b[:, WHH:WHH + H3]                       # (1, 3H)
        logits = (x * b[:, AWX:AWX + L]
                  + hseg[:, H3:H3 + L]
                  + b[:, AWH:AWH + L])                                # (1, L)

        # ---- attn_weights = softmax(logits)
        m = jnp.max(logits, axis=1, keepdims=True)
        e = jnp.exp(logits - m)
        s = jnp.sum(e, axis=1, keepdims=True)
        # approx=True would route the divide to the EUP but exceeds the 1e-5
        # validation tolerance; keep the exact reciprocal.
        attn_w = e * pl.reciprocal(s)                                 # (1, L)

        # ---- attn_applied = bmm(attn_weights, encoder_outputs)
        attn_applied = jnp.dot(attn_w, enc_ref[...],
                               preferred_element_type=jnp.float32)    # (1, H)

        # ---- attn_combine(cat(x, attn_applied))
        comb = (x * b[:, CWX:CWX + H]
                + jnp.dot(attn_applied, w_ref[:, CWA:CWA + H],
                          preferred_element_type=jnp.float32)
                + b[:, CWA:CWA + H])                                  # (1, H)

        # ---- GRU input-side gates fused in one MXU call: comb @ [wih_r|wih_z|wih_n]
        gi = (jnp.dot(comb, w_ref[:, WIH:WIH + H3],
                      preferred_element_type=jnp.float32)
              + b[:, WIH:WIH + H3])                                   # (1, 3H)

        # PyTorch gate order: r, z, n
        rz = jax.nn.sigmoid(gi[:, 0:2 * H] + gh[:, 0:2 * H])
        r = rz[:, 0:H]
        z = rz[:, H:2 * H]
        n = jnp.tanh(gi[:, 2 * H:H3] + r * gh[:, 2 * H:H3])
        h_new = (1.0 - z) * n + z * h                                 # (1, H)

        # ---- output projection
        out = (jnp.dot(h_new, w_ref[:, OUTW:OUTW + O],
                       preferred_element_type=jnp.float32)
               + b[:, OUTW:OUTW + O])                                 # (1, O)

        # ---- pack all three results into a single lane-dense output tile
        o_ref[...] = jnp.zeros_like(o_ref)
        o_ref[0:1, 0:O] = out
        o_ref[1:2, 0:H] = h_new
        o_ref[2:3, 0:L] = attn_w

    return kernel


def attn_decoder_forward(inp, hidden, encoder_outputs, packed, H, L, O):
    """Mirrors AttnDecoderRNN.forward.  inp: (1,1,1), hidden: (1,1,H),
    encoder_outputs: (L, H).  Returns (output (1,O), hidden (1,1,H),
    attn_weights (1,L))."""
    x2 = inp.reshape(1, 1).astype(jnp.float32)
    h2 = hidden.reshape(1, H).astype(jnp.float32)
    enc = encoder_outputs.astype(jnp.float32)

    pack_w = _round_up(max(H, L, O), 128)
    kernel = make_kernel(H, L, O)

    vmem = pl.BlockSpec(memory_space=pltpu.MemorySpace.VMEM)
    smem = pl.BlockSpec(memory_space=pltpu.MemorySpace.SMEM)

    packed_out = pl.pallas_call(
        kernel,
        out_shape=jax.ShapeDtypeStruct((3, pack_w), jnp.float32),
        in_specs=[smem, vmem, vmem, vmem, vmem],
        out_specs=vmem,
    )(x2, h2, enc, packed["wslab"], packed["bslab"])

    out = packed_out[0:1, :O]
    h_new = packed_out[1:2, :H].reshape(1, 1, H)
    attn_w = packed_out[2:3, :L]
    return out, h_new, attn_w


def init_params(key, hidden_size, output_size, seq_len=10):
    """Deterministic parameter init, shapes matching AttnDecoderRNN.__init__.
    Weights are stored pre-transposed to (in, out)."""
    H, O, L = hidden_size, output_size, seq_len
    ks = jax.random.split(key, 10)

    def u(k, shape, fan_in):
        bound = 1.0 / jnp.sqrt(fan_in)
        return jax.random.uniform(k, shape, jnp.float32, -bound, bound)

    attn_wT = u(ks[0], (H + 1, L), H + 1)       # attn: Linear(H+1, 10)
    attn_b = u(ks[1], (1, L), H + 1)
    comb_wT = u(ks[2], (H + 1, H), H + 1)       # attn_combine: Linear(H+1, H)
    comb_b = u(ks[3], (1, H), H + 1)
    wih = u(ks[4], (3, H, H), H)                # GRU(H, H), gate order r,z,n
    whh = u(ks[5], (3, H, H), H)
    bih = u(ks[6], (3, 1, H), H)
    bhh = u(ks[7], (3, 1, H), H)
    out_wT = u(ks[8], (H, O), H)                # out: Linear(H, O)
    out_b = u(ks[9], (1, O), H)

    return {
        "attn_w_x": attn_wT[:1, :], "attn_w_h": attn_wT[1:, :], "attn_b": attn_b,
        "comb_w_x": comb_wT[:1, :], "comb_w_a": comb_wT[1:, :], "comb_b": comb_b,
        "gru_wih": wih, "gru_whh": whh, "gru_bih": bih, "gru_bhh": bhh,
        "out_w": out_wT, "out_b": out_b,
    }


def pack_params(p, H, L, O):
    """Pack all weights into one (H, COLS) slab and all biases / x-row-vectors
    into one (1, COLS) slab (lane-tile-aligned segments)."""
    off = make_offsets(H, L, O)
    C = off["COLS"]

    def place(slab, col, mat):
        return slab.at[:, col:col + mat.shape[1]].set(mat)

    whh = jnp.concatenate([p["gru_whh"][g] for g in range(3)], axis=1)  # (H, 3H)
    wih = jnp.concatenate([p["gru_wih"][g] for g in range(3)], axis=1)  # (H, 3H)
    bhh = jnp.concatenate([p["gru_bhh"][g] for g in range(3)], axis=1)  # (1, 3H)
    bih = jnp.concatenate([p["gru_bih"][g] for g in range(3)], axis=1)  # (1, 3H)

    wslab = jnp.zeros((H, C), jnp.float32)
    wslab = place(wslab, off["WHH"], whh)
    wslab = place(wslab, off["AWH"], p["attn_w_h"])
    wslab = place(wslab, off["WIH"], wih)
    wslab = place(wslab, off["CWA"], p["comb_w_a"])
    wslab = place(wslab, off["OUTW"], p["out_w"])

    bslab = jnp.zeros((1, C), jnp.float32)
    bslab = place(bslab, off["WHH"], bhh)
    bslab = place(bslab, off["AWH"], p["attn_b"])
    bslab = place(bslab, off["WIH"], bih)
    bslab = place(bslab, off["CWA"], p["comb_b"])
    bslab = place(bslab, off["OUTW"], p["out_b"])
    bslab = place(bslab, off["AWX"], p["attn_w_x"])
    bslab = place(bslab, off["CWX"], p["comb_w_x"])

    return {"wslab": wslab, "bslab": bslab}


def reference_forward(inp, hidden, enc, p):
    """Pure-JAX reference replicating the PyTorch forward exactly."""
    H = hidden.shape[-1]
    x = inp.reshape(1, 1)
    h = hidden.reshape(1, H)
    cat1 = jnp.concatenate([x, h], axis=1)
    attn_w_full = jnp.concatenate([p["attn_w_x"], p["attn_w_h"]], axis=0)
    attn_w = jax.nn.softmax(cat1 @ attn_w_full + p["attn_b"], axis=1)
    attn_applied = attn_w @ enc
    cat2 = jnp.concatenate([x, attn_applied], axis=1)
    comb_w_full = jnp.concatenate([p["comb_w_x"], p["comb_w_a"]], axis=0)
    comb = cat2 @ comb_w_full + p["comb_b"]
    gi = jnp.stack([comb @ p["gru_wih"][g] + p["gru_bih"][g] for g in range(3)])
    gh = jnp.stack([h @ p["gru_whh"][g] + p["gru_bhh"][g] for g in range(3)])
    r = jax.nn.sigmoid(gi[0] + gh[0])
    z = jax.nn.sigmoid(gi[1] + gh[1])
    n = jnp.tanh(gi[2] + r * gh[2])
    h_new = (1.0 - z) * n + z * h
    out = h_new @ p["out_w"] + p["out_b"]
    return out, h_new.reshape(1, 1, H), attn_w


if __name__ == "__main__":
    HIDDEN = 32
    OUTPUT = 10
    SEQ = 10   # fixed by nn.Linear(hidden_size + 1, 10) in the module

    key = jax.random.PRNGKey(0)
    k_in, k_h, k_enc, k_par = jax.random.split(key, 4)

    inp = jax.random.normal(k_in, (1, 1, 1), jnp.float32)          # input.view(1,1,-1)
    hidden = jax.random.normal(k_h, (1, 1, HIDDEN), jnp.float32)   # (1,1,H)
    enc = jax.random.normal(k_enc, (SEQ, HIDDEN), jnp.float32)     # encoder_outputs (10,H)
    params = init_params(k_par, HIDDEN, OUTPUT, SEQ)
    packed = pack_params(params, HIDDEN, SEQ, OUTPUT)

    out, h_new, attn_w = attn_decoder_forward(inp, hidden, enc, packed,
                                              HIDDEN, SEQ, OUTPUT)
    jax.block_until_ready((out, h_new, attn_w))

    # correctness check against a pure-JAX fp32 reference
    ro, rh, ra = reference_forward(inp, hidden, enc, params)
    assert out.shape == (1, OUTPUT) and h_new.shape == (1, 1, HIDDEN) and attn_w.shape == (1, SEQ)
    assert jnp.allclose(out, ro, atol=1e-5), "output mismatch"
    assert jnp.allclose(h_new, rh, atol=1e-5), "hidden mismatch"
    assert jnp.allclose(attn_w, ra, atol=1e-5), "attn_weights mismatch"

    print("KERNEL_OK")
</pallas_src>

<mosaic_0001>
module attributes {stable_mosaic.version = 11 : i64} {
  func.func @kernel(%arg0: memref<1x1xf32, #tpu.memory_space<smem>>, %arg1: memref<1x32xf32, #tpu.memory_space<vmem>>, %arg2: memref<10x32xf32, #tpu.memory_space<vmem>>, %arg3: memref<32x512xf32, #tpu.memory_space<vmem>>, %arg4: memref<1x512xf32, #tpu.memory_space<vmem>>, %arg5: memref<3x128xf32, #tpu.memory_space<vmem>>) attributes {dimension_semantics = [], scalar_prefetch = 0 : i64, scratch_operands = 0 : i64, tpu.core_type = #tpu.core_type<tc>} {
    %c0 = arith.constant 0 : index
    %c0_0 = arith.constant 0 : index
    %0 = memref.load %arg0[%c0, %c0_0] : memref<1x1xf32, #tpu.memory_space<smem>>
    %c0_1 = arith.constant 0 : index
    %c0_2 = arith.constant 0 : index
    %1 = vector.load %arg1[%c0_1, %c0_2] : memref<1x32xf32, #tpu.memory_space<vmem>>, vector<1x32xf32>
    %c0_3 = arith.constant 0 : index
    %c0_4 = arith.constant 0 : index
    %2 = vector.load %arg4[%c0_3, %c0_4] : memref<1x512xf32, #tpu.memory_space<vmem>>, vector<1x512xf32>
    %c0_5 = arith.constant 0 : index
    %c0_6 = arith.constant 0 : index
    %3 = vector.load %arg3[%c0_5, %c0_6] : memref<32x512xf32, #tpu.memory_space<vmem>>, vector<32x106xf32>
    %cst = arith.constant dense<0.000000e+00> : vector<1x106xf32>
    %4 = tpu.matmul %1, %3, %cst {dimension_numbers = #tpu.dot_dimension_numbers<[1], [0], [0], [1], [0, 0, 1, 1], [], []>} : vector<1x32xf32>, vector<32x106xf32>, vector<1x106xf32> -> vector<1x106xf32>
    %5 = vector.extract_strided_slice %4 {offsets = [0, 0], sizes = [1, 96], strides = [1, 1]} : vector<1x106xf32> to vector<1x96xf32>
    %6 = vector.extract_strided_slice %2 {offsets = [0, 0], sizes = [1, 96], strides = [1, 1]} : vector<1x512xf32> to vector<1x96xf32>
    %7 = arith.addf %5, %6 : vector<1x96xf32>
    %8 = vector.extract_strided_slice %2 {offsets = [0, 394], sizes = [1, 10], strides = [1, 1]} : vector<1x512xf32> to vector<1x10xf32>
    %9 = vector.broadcast %0 : f32 to vector<1x10xf32>
    %10 = arith.mulf %9, %8 : vector<1x10xf32>
    %11 = vector.extract_strided_slice %4 {offsets = [0, 96], sizes = [1, 10], strides = [1, 1]} : vector<1x106xf32> to vector<1x10xf32>
    %12 = arith.addf %10, %11 : vector<1x10xf32>
    %13 = vector.extract_strided_slice %2 {offsets = [0, 96], sizes = [1, 10], strides = [1, 1]} : vector<1x512xf32> to vector<1x10xf32>
    %14 = arith.addf %12, %13 : vector<1x10xf32>
    %cst_7 = arith.constant dense<0xFF800000> : vector<1xf32>
    %15 = vector.multi_reduction <maximumf>, %14, %cst_7 [1] : vector<1x10xf32> to vector<1xf32>
    %16 = vector.shape_cast %15 : vector<1xf32> to vector<1x1xf32>
    %17 = vector.broadcast %16 : vector<1x1xf32> to vector<1x10xf32>
    %18 = arith.subf %14, %17 : vector<1x10xf32>
    %19 = math.exp %18 : vector<1x10xf32>
    %cst_8 = arith.constant dense<0.000000e+00> : vector<1xf32>
    %20 = vector.multi_reduction <add>, %19, %cst_8 [1] : vector<1x10xf32> to vector<1xf32>
    %21 = vector.shape_cast %20 : vector<1xf32> to vector<1x1xf32>
    %22 = tpu.reciprocal %21 : vector<1x1xf32> -> vector<1x1xf32>
    %23 = vector.broadcast %22 : vector<1x1xf32> to vector<1x10xf32>
    %24 = arith.mulf %19, %23 : vector<1x10xf32>
    %c0_9 = arith.constant 0 : index
    %c0_10 = arith.constant 0 : index
    %25 = vector.load %arg2[%c0_9, %c0_10] : memref<10x32xf32, #tpu.memory_space<vmem>>, vector<10x32xf32>
    %cst_11 = arith.constant dense<0.000000e+00> : vector<1x32xf32>
    %26 = tpu.matmul %24, %25, %cst_11 {dimension_numbers = #tpu.dot_dimension_numbers<[1], [0], [0], [1], [0, 0, 1, 1], [], []>} : vector<1x10xf32>, vector<10x32xf32>, vector<1x32xf32> -> vector<1x32xf32>
    %27 = vector.extract_strided_slice %2 {offsets = [0, 404], sizes = [1, 32], strides = [1, 1]} : vector<1x512xf32> to vector<1x32xf32>
    %28 = vector.broadcast %0 : f32 to vector<1x32xf32>
    %29 = arith.mulf %28, %27 : vector<1x32xf32>
    %c0_12 = arith.constant 0 : index
    %c256 = arith.constant 256 : index
    %30 = vector.load %arg3[%c0_12, %c256] : memref<32x512xf32, #tpu.memory_space<vmem>>, vector<32x32xf32>
    %cst_13 = arith.constant dense<0.000000e+00> : vector<1x32xf32>
    %31 = tpu.matmul %26, %30, %cst_13 {dimension_numbers = #tpu.dot_dimension_numbers<[1], [0], [0], [1], [0, 0, 1, 1], [], []>} : vector<1x32xf32>, vector<32x32xf32>, vector<1x32xf32> -> vector<1x32xf32>
    %32 = arith.addf %29, %31 : vector<1x32xf32>
    %33 = vector.extract_strided_slice %2 {offsets = [0, 256], sizes = [1, 32], strides = [1, 1]} : vector<1x512xf32> to vector<1x32xf32>
    %34 = arith.addf %32, %33 : vector<1x32xf32>
    %c0_14 = arith.constant 0 : index
    %c128 = arith.constant 128 : index
    %35 = vector.load %arg3[%c0_14, %c128] : memref<32x512xf32, #tpu.memory_space<vmem>>, vector<32x96xf32>
    %cst_15 = arith.constant dense<0.000000e+00> : vector<1x96xf32>
    %36 = tpu.matmul %34, %35, %cst_15 {dimension_numbers = #tpu.dot_dimension_numbers<[1], [0], [0], [1], [0, 0, 1, 1], [], []>} : vector<1x32xf32>, vector<32x96xf32>, vector<1x96xf32> -> vector<1x96xf32>
    %37 = vector.extract_strided_slice %2 {offsets = [0, 128], sizes = [1, 96], strides = [1, 1]} : vector<1x512xf32> to vector<1x96xf32>
    %38 = arith.addf %36, %37 : vector<1x96xf32>
    %39 = vector.extract_strided_slice %38 {offsets = [0, 0], sizes = [1, 64], strides = [1, 1]} : vector<1x96xf32> to vector<1x64xf32>
    %40 = vector.extract_strided_slice %7 {offsets = [0, 0], sizes = [1, 64], strides = [1, 1]} : vector<1x96xf32> to vector<1x64xf32>
    %41 = arith.addf %39, %40 : vector<1x64xf32>
    %42 = arith.negf %41 : vector<1x64xf32>
    %43 = math.exp %42 : vector<1x64xf32>
    %cst_16 = arith.constant 1.000000e+00 : f32
    %44 = vector.broadcast %cst_16 : f32 to vector<1x64xf32>
    %45 = arith.addf %44, %43 : vector<1x64xf32>
    %46 = arith.divf %44, %45 : vector<1x64xf32>
    %47 = vector.extract_strided_slice %46 {offsets = [0, 0], sizes = [1, 32], strides = [1, 1]} : vector<1x64xf32> to vector<1x32xf32>
    %48 = vector.extract_strided_slice %46 {offsets = [0, 32], sizes = [1, 32], strides = [1, 1]} : vector<1x64xf32> to vector<1x32xf32>
    %49 = vector.extract_strided_slice %38 {offsets = [0, 64], sizes = [1, 32], strides = [1, 1]} : vector<1x96xf32> to vector<1x32xf32>
    %50 = vector.extract_strided_slice %7 {offsets = [0, 64], sizes = [1, 32], strides = [1, 1]} : vector<1x96xf32> to vector<1x32xf32>
    %51 = arith.mulf %47, %50 : vector<1x32xf32>
    %52 = arith.addf %49, %51 : vector<1x32xf32>
    %53 = math.tanh %52 : vector<1x32xf32>
    %cst_17 = arith.constant 1.000000e+00 : f32
    %54 = vector.broadcast %cst_17 : f32 to vector<1x32xf32>
    %55 = arith.subf %54, %48 : vector<1x32xf32>
    %56 = arith.mulf %55, %53 : vector<1x32xf32>
    %57 = arith.mulf %48, %1 : vector<1x32xf32>
    %58 = arith.addf %56, %57 : vector<1x32xf32>
    %c0_18 = arith.constant 0 : index
    %c384 = arith.constant 384 : index
    %59 = vector.load %arg3[%c0_18, %c384] : memref<32x512xf32, #tpu.memory_space<vmem>>, vector<32x10xf32>
    %cst_19 = arith.constant dense<0.000000e+00> : vector<1x10xf32>
    %60 = tpu.matmul %58, %59, %cst_19 {dimension_numbers = #tpu.dot_dimension_numbers<[1], [0], [0], [1], [0, 0, 1, 1], [], []>} : vector<1x32xf32>, vector<32x10xf32>, vector<1x10xf32> -> vector<1x10xf32>
    %61 = vector.extract_strided_slice %2 {offsets = [0, 384], sizes = [1, 10], strides = [1, 1]} : vector<1x512xf32> to vector<1x10xf32>
    %62 = arith.addf %60, %61 : vector<1x10xf32>
    %cst_20 = arith.constant 0.000000e+00 : f32
    %63 = vector.broadcast %cst_20 : f32 to vector<3x128xf32>
    %c0_21 = arith.constant 0 : index
    %c0_22 = arith.constant 0 : index
    %64 = vector.load %arg5[%c0_21, %c0_22] : memref<3x128xf32, #tpu.memory_space<vmem>>, vector<3x128xf32>
    tpu.vector_store %arg5[%c0_21, %c0_22], %63 {strides = array<i32>} : memref<3x128xf32, #tpu.memory_space<vmem>>, vector<3x128xf32>,
    %c0_23 = arith.constant 0 : index
    %c0_24 = arith.constant 0 : index
    %65 = vector.load %arg5[%c0_23, %c0_24] : memref<3x128xf32, #tpu.memory_space<vmem>>, vector<1x10xf32>
    tpu.vector_store %arg5[%c0_23, %c0_24], %62 {strides = array<i32>} : memref<3x128xf32, #tpu.memory_space<vmem>>, vector<1x10xf32>,
    %c1 = arith.constant 1 : index
    %c0_25 = arith.constant 0 : index
    %66 = vector.load %arg5[%c1, %c0_25] : memref<3x128xf32, #tpu.memory_space<vmem>>, vector<1x32xf32>
    tpu.vector_store %arg5[%c1, %c0_25], %58 {strides = array<i32>} : memref<3x128xf32, #tpu.memory_space<vmem>>, vector<1x32xf32>,
    %c2 = arith.constant 2 : index
    %c0_26 = arith.constant 0 : index
    %67 = vector.load %arg5[%c2, %c0_26] : memref<3x128xf32, #tpu.memory_space<vmem>>, vector<1x10xf32>
    tpu.vector_store %arg5[%c2, %c0_26], %24 {strides = array<i32>} : memref<3x128xf32, #tpu.memory_space<vmem>>, vector<1x10xf32>,
    return
  }
}

</mosaic_0001>

<llo_original>
// kernel: tpu_custom_call.1
$region0: #{tpu_custom_call.1}
  #allocation0 [shape = 'u32[]', space=smem, size = 0x4, offset = 0x4, fixed_abs, tag = 'smem constant byte address 0x4 - core index']
  #allocation1 [shape = 'u32[72,128]{1,0:T(1,128)}', space=vmem, size = 0x9000, scoped, tag = 'internal scratch']
  #allocation2 [shape = 'f32[1,1]{1,0:T(1,128)S(6)}', space=smem, size = 0x200, scoped, tag = 'scoped memory for tpu_custom_call.1']
  %s0 = inlined_call_operand.<no memory space> [shape: f32[1,1], index: 0, kind: input, shape index: {}]
  %s1 = inlined_call_operand.hbm [shape: f32[1,32], index: 1, kind: input, shape index: {}]
  %s2 = inlined_call_operand.hbm [shape: f32[10,32], index: 2, kind: input, shape index: {}]
  %s3 = inlined_call_operand.hbm [shape: f32[32,512], index: 3, kind: input, shape index: {}]
  %s4 = inlined_call_operand.vmem [shape: f32[1,512], index: 4, kind: input, shape index: {}]
  %s5 = inlined_call_operand.hbm [shape: f32[3,128], index: 5, kind: output, shape index: {}]
  %s6 = sld [smem:[#allocation0]]
  $region42: #{tpu_custom_call.1} parent=0
    _
  %s8 = ssub.s32 1, %s6
  %s9 = scalar_select 0, %s8, %s6
  %10 = sst [smem:[#allocation2]] %s0
  $region1: #{tpu_custom_call.1} parent=0
    #allocation3 [shape = 'u8[512]{0}', space=vmem, size = 0x400, scoped, tag = 'input window, operand 1, single buffered']
    #allocation4 [shape = 's32[1]{0}', space=sflag, size = 0x4, scoped, tag = 'scoped memory for tpu_custom_call.1']
    #allocation5 [shape = 's32[1]{0}', space=sflag, size = 0x4, scoped, tag = 'scoped memory for tpu_custom_call.1']
    #allocation6 [shape = 'u8[8192]{0}', space=vmem, size = 0x2000, scoped, tag = 'input window, operand 2, single buffered']
    #allocation7 [shape = 's32[1]{0}', space=sflag, size = 0x4, scoped, tag = 'scoped memory for tpu_custom_call.1']
    #allocation8 [shape = 'u8[65536]{0}', space=vmem, size = 0x10000, scoped, tag = 'input window, operand 3, single buffered']
    #allocation9 [shape = 'u8[2048]{0}', space=vmem, size = 0x800, scoped, tag = 'output window, operand 0, single buffered']
    %11 = vsyncpa [#allocation4], 0
    %12 = vsyncpa [#allocation7], 0
    %13 = vsyncpa [#allocation5], 0
    // Predicated region
    $region2: #{tpu_custom_call.1} parent=1 // pred_check
      _
    $region3: #{tpu_custom_call.1} parent=1 // pred_check_branch
      %15 = sbr.rel (0) target = $region5
    $region4: #{tpu_custom_call.1} parent=1 // pred_region
      _
    $region5: #{tpu_custom_call.1} parent=1 // pred_fallthru
      _
    // Predicated region
    $region6: #{tpu_custom_call.1} parent=1 // pred_check
      _
    $region7: #{tpu_custom_call.1} parent=1 // pred_check_branch
      %17 = sbr.rel (0) target = $region9
    $region8: #{tpu_custom_call.1} parent=1 // pred_region
      %19 = vsyncadd [#allocation4], 0
      %s21 = sshll.u32 %s1, 4
      %s22 = int_to_ptr.hbm [resolvable:$true] %s21
      %s23 = sshll.u32 [#allocation3], 4
      %s24 = int_to_ptr.vmem [resolvable:$true] %s23
      %26 = dma.hbm_to_vmem [thread:$0]  %s22, 16, %s24, [#allocation4]
    $region9: #{tpu_custom_call.1} parent=1 // pred_fallthru
      _
    // Predicated region
    $region10: #{tpu_custom_call.1} parent=1 // pred_check
      _
    $region11: #{tpu_custom_call.1} parent=1 // pred_check_branch
      %28 = sbr.rel (0) target = $region13
    $region12: #{tpu_custom_call.1} parent=1 // pred_region
      %30 = vsyncadd [#allocation7], 0
      %s31 = sshll.u32 %s2, 4
      %s32 = int_to_ptr.hbm [resolvable:$true] %s31
      %s33 = sshll.u32 [#allocation6], 4
      %s34 = int_to_ptr.vmem [resolvable:$true] %s33
      %39 = dma.hbm_to_vmem [thread:$0]  %s32, 256, %s34, [#allocation7], 128, 128, 8
    $region13: #{tpu_custom_call.1} parent=1 // pred_fallthru
      _
    // Predicated region
    $region14: #{tpu_custom_call.1} parent=1 // pred_check
      _
    $region15: #{tpu_custom_call.1} parent=1 // pred_check_branch
      %41 = sbr.rel (0) target = $region17
    $region16: #{tpu_custom_call.1} parent=1 // pred_region
      %43 = vsyncadd [#allocation7], 0
      %s44 = sshll.u32 %s3, 4
      %s45 = int_to_ptr.hbm [resolvable:$true] %s44
      %s46 = sshll.u32 [#allocation8], 4
      %s47 = int_to_ptr.vmem [resolvable:$true] %s46
      %52 = dma.hbm_to_vmem [thread:$0]  %s45, 2048, %s47, [#allocation7], 512, 512, 32
    $region17: #{tpu_custom_call.1} parent=1 // pred_fallthru
      _
    // Predicated region
    $region18: #{tpu_custom_call.1} parent=1 // pred_check
      _
    $region19: #{tpu_custom_call.1} parent=1 // pred_check_branch
      %54 = sbr.rel (0) target = $region21
    $region20: #{tpu_custom_call.1} parent=1 // pred_region
      _
    $region21: #{tpu_custom_call.1} parent=1 // pred_fallthru
      _
    // Predicated region
    $region22: #{tpu_custom_call.1} parent=1 // pred_check
      _
    $region23: #{tpu_custom_call.1} parent=1 // pred_check_branch
      %56 = sbr.rel (0) target = $region25
    $region24: #{tpu_custom_call.1} parent=1 // pred_region
      %58 = dma.done [#allocation4], 16
    $region25: #{tpu_custom_call.1} parent=1 // pred_fallthru
      _
    // Predicated region
    $region26: #{tpu_custom_call.1} parent=1 // pred_check
      _
    $region27: #{tpu_custom_call.1} parent=1 // pred_check_branch
      %60 = sbr.rel (0) target = $region29
    $region28: #{tpu_custom_call.1} parent=1 // pred_region
      %62 = dma.done [#allocation7], 256
    $region29: #{tpu_custom_call.1} parent=1 // pred_fallthru
      _
    // Predicated region
    $region30: #{tpu_custom_call.1} parent=1 // pred_check
      _
    $region31: #{tpu_custom_call.1} parent=1 // pred_check_branch
      %64 = sbr.rel (0) target = $region33
    $region32: #{tpu_custom_call.1} parent=1 // pred_region
      %66 = dma.done [#allocation7], 2048
    $region33: #{tpu_custom_call.1} parent=1 // pred_fallthru
      _
    %s67 = sld [smem:[#allocation2]]
    %v68 = vld [vmem:[#allocation3] sm:$0x1]
    %v69 = vld [vmem:[%s4] sm:$0xf]
    %v70 = vld [vmem:[#allocation8] sm:$0xff]
    %v71 = vld [vmem:[#allocation8 + $0x20] sm:$0xff]
    %v72 = vld [vmem:[#allocation8 + $0x40] sm:$0xff]
    %v73 = vld [vmem:[#allocation8 + $0x60] sm:$0xff]
    %vm74 = vcmask 261120
    %v76 = vsel %vm74, %v68, 0
    %78 = vmatpush.msra.mxu0 0.0
    %79 = vmatpush.msra.mxu0 0.0
    %80 = vmatpush.msra.mxu0 0.0
    %81 = vmatpush.msra.mxu0 0.0
    %82 = vmatpush.msra.mxu0 0.0
    %83 = vmatpush.msra.mxu0 0.0
    %84 = vmatpush.msra.mxu0 0.0
    %85 = vmatpush.msra.mxu0 0.0
    %86 = vmatpush.msra.mxu0 0.0
    %87 = vmatpush.msra.mxu0 0.0
    %88 = vmatpush.msra.mxu0 0.0
    %89 = vmatpush.msra.mxu0 0.0
    %90 = vmatpush.msra.mxu0 %v73
    %91 = vmatpush.msra.mxu0 %v72
    %92 = vmatpush.msra.mxu0 %v71
    %93 = vmatpush.msra.mxu0 %v70
    %94 = vmatmul.f32.gmra.mxu0 %v76
    %v95 = vpop.f32.mrf.mxu0
    %v96 = vadd.f32 0.0, %v95
    %97 = vdwg.mxu0
    %v98 = vadd.f32 %v96, %v69
    %v99 = vstv %s67
    %101 = vrot.lane.b32.xlu0 %v69, 118
    %v102 = vpop.permute.xlu0 %101
    %v103 = vrot.slane %v102, 3
    %v105 = vmul.f32 %v99, %v103
    %107 = vrot.lane.b32.xlu0 %v96, 32
    %v108 = vpop.permute.xlu0 %107
    %v110 = vadd.f32 %v105, %v108
    %111 = vrot.lane.b32.xlu0 %v69, 32
    %v112 = vpop.permute.xlu0 %111
    %v114 = vadd.f32 %v110, %v112
    %vm115 = vcmask 73728
    %v116 = vsel %vm115, %v114, -inf
    %117 = vmax.xlane.f32.xlu0 %v116
    %v118 = vpop.xlane.xlu0 %117
    %v119 = vsub.f32 %v114, %v118
    %v120 = vmul.f32 %v119, 1.442695
    %v121 = vpow.pop %v120
    %v122 = vsel %vm115, %v121, 0.0
    %123 = vadd.xlane.f32.xlu0 %v122
    %v124 = vpop.xlane.xlu0 %123
    %v125 = vrcp.pop %v124
    %v126 = vmul.f32 %v124, %v125
    %v127 = vsub.f32 1.0, %v126
    %v128 = vmul.f32 %v125, %v127
    %v129 = vadd.f32 %v125, %v128
    %vm130 = vweird.f32 %v124
    %vm131 = vweird.f32 %v125
    %vm132 = vmor %vm130, %vm131
    %v133 = vsel %vm132, %v125, %v129
    %v134 = vand.u32 2147483647, %v124
    %vm135 = vcmp.eq.f32.partialorder %v134, 8.507059e+37
    %v136 = vand.u32 %v124, 2147483648
    %v137 = vor.u32 1.1754944e-38, %v136
    %v138 = vsel %vm135, %v137, %v133
    %v139 = vmul.f32 %v121, %v138
    %v140 = vld [vmem:[#allocation6] sm:$0xff]
    %v141 = vld [vmem:[#allocation6 + $0x8] sm:$0x3]
    %vm142 = vcmask 80896
    %v144 = vsel %vm142, %v139, 0
    %vm146 = vcmask 1041408
    %v148 = vsel %vm146, %v141, 0
    %150 = vmatpush.msra.mxu0 0.0
    %151 = vmatpush.msra.mxu0 0.0
    %152 = vmatpush.msra.mxu0 0.0
    %153 = vmatpush.msra.mxu0 0.0
    %154 = vmatpush.msra.mxu0 0.0
    %155 = vmatpush.msra.mxu0 0.0
    %156 = vmatpush.msra.mxu0 0.0
    %157 = vmatpush.msra.mxu0 0.0
    %158 = vmatpush.msra.mxu0 0.0
    %159 = vmatpush.msra.mxu0 0.0
    %160 = vmatpush.msra.mxu0 0.0
    %161 = vmatpush.msra.mxu0 0.0
    %162 = vmatpush.msra.mxu0 0.0
    %163 = vmatpush.msra.mxu0 0.0
    %164 = vmatpush.msra.mxu0 %v148
    %165 = vmatpush.msra.mxu0 %v140
    %166 = vmatmul.f32.gmra.mxu0 %v144
    %v167 = vpop.f32.mrf.mxu0
    %v168 = vadd.f32 0.0, %v167
    %169 = vdwg.mxu0
    %170 = vrot.lane.b32.xlu0 %v69, 108
    %v171 = vpop.permute.xlu0 %170
    %v172 = vrot.slane %v171, 3
    %v174 = vmul.f32 %v99, %v172
    %v175 = vld [vmem:[#allocation8 + $0x10] sm:$0xff]
    %v176 = vld [vmem:[#allocation8 + $0x30] sm:$0xff]
    %v177 = vld [vmem:[#allocation8 + $0x50] sm:$0xff]
    %v178 = vld [vmem:[#allocation8 + $0x70] sm:$0xff]
    %v180 = vsel %vm74, %v168, 0
    %182 = vmatpush.msra.mxu0 0.0
    %183 = vmatpush.msra.mxu0 0.0
    %184 = vmatpush.msra.mxu0 0.0
    %185 = vmatpush.msra.mxu0 0.0
    %186 = vmatpush.msra.mxu0 0.0
    %187 = vmatpush.msra.mxu0 0.0
    %188 = vmatpush.msra.mxu0 0.0
    %189 = vmatpush.msra.mxu0 0.0
    %190 = vmatpush.msra.mxu0 0.0
    %191 = vmatpush.msra.mxu0 0.0
    %192 = vmatpush.msra.mxu0 0.0
    %193 = vmatpush.msra.mxu0 0.0
    %194 = vmatpush.msra.mxu0 %v178
    %195 = vmatpush.msra.mxu0 %v177
    %196 = vmatpush.msra.mxu0 %v176
    %197 = vmatpush.msra.mxu0 %v175
    %198 = vmatmul.f32.gmra.mxu0 %v180
    %v199 = vpop.f32.mrf.mxu0
    %v200 = vadd.f32 0.0, %v199
    %201 = vdwg.mxu0
    %v202 = vadd.f32 %v174, %v200
    %v203 = vrot.slane %v69, 2
    %v205 = vadd.f32 %v202, %v203
    %v206 = vld [vmem:[#allocation8 + $0x8] sm:$0xff]
    %v207 = vld [vmem:[#allocation8 + $0x28] sm:$0xff]
    %v208 = vld [vmem:[#allocation8 + $0x48] sm:$0xff]
    %v209 = vld [vmem:[#allocation8 + $0x68] sm:$0xff]
    %v210 = vperm.slane %v69, 1
    %v213 = vsel %vm74, %v205, 0
    %215 = vmatpush.msra.mxu0 0.0
    %216 = vmatpush.msra.mxu0 0.0
    %217 = vmatpush.msra.mxu0 0.0
    %218 = vmatpush.msra.mxu0 0.0
    %219 = vmatpush.msra.mxu0 0.0
    %220 = vmatpush.msra.mxu0 0.0
    %221 = vmatpush.msra.mxu0 0.0
    %222 = vmatpush.msra.mxu0 0.0
    %223 = vmatpush.msra.mxu0 0.0
    %224 = vmatpush.msra.mxu0 0.0
    %225 = vmatpush.msra.mxu0 0.0
    %226 = vmatpush.msra.mxu0 0.0
    %227 = vmatpush.msra.mxu0 %v209
    %228 = vmatpush.msra.mxu0 %v208
    %229 = vmatpush.msra.mxu0 %v207
    %230 = vmatpush.msra.mxu0 %v206
    %231 = vmatmul.f32.gmra.mxu0 %v213
    %v232 = vpop.f32.mrf.mxu0
    %v233 = vadd.f32 %v210, %v232
    %234 = vdwg.mxu0
    %v235 = vadd.f32 %v233, %v98
    %v236 = vxor.u32 %v235, 2147483648
    %v237 = vmul.f32 %v236, 1.442695
    %v238 = vpow.pop %v237
    %v239 = vadd.f32 %v238, 1.0
    %v240 = vrcp.pop %v239
    %v241 = vmul.f32 %v239, %v240
    %v242 = vsub.f32 1.0, %v241
    %v243 = vmul.f32 %v240, %v242
    %v244 = vadd.f32 %v240, %v243
    %vm245 = vweird.f32 %v239
    %vm246 = vweird.f32 %v240
    %vm247 = vmor %vm245, %vm246
    %v248 = vsel %vm247, %v240, %v244
    %v249 = vand.u32 2147483647, %v239
    %vm250 = vcmp.eq.f32.partialorder %v249, 8.507059e+37
    %v251 = vand.u32 %v239, 2147483648
    %v252 = vor.u32 1.1754944e-38, %v251
    %v253 = vsel %vm250, %v252, %v248
    %v254 = vmul.f32 1.0, %v253
    %256 = vrot.lane.b32.xlu0 %v98, 64
    %v257 = vpop.permute.xlu0 %256
    %v259 = vmul.f32 %v254, %v257
    %261 = vrot.lane.b32.xlu0 %v259, 64
    %v262 = vpop.permute.xlu0 %261
    %v264 = vadd.f32 %v233, %v262
    %v265 = vtanh.pop %v264
    %v266 = vsub.f32 1.0, %v254
    %268 = vrot.lane.b32.xlu0 %v265, 96
    %v269 = vpop.permute.xlu0 %268
    %v271 = vmul.f32 %v266, %v269
    %v272 = vperm.slane %v68, 0
    %273 = vrot.lane.b32.xlu0 %v272, 32
    %v274 = vpop.permute.xlu0 %273
    %v276 = vmul.f32 %v254, %v274
    %v277 = vadd.f32 %v271, %v276
    %v278 = vld [vmem:[#allocation8 + $0x18] sm:$0xff]
    %v279 = vld [vmem:[#allocation8 + $0x38] sm:$0xff]
    %v280 = vld [vmem:[#allocation8 + $0x58] sm:$0xff]
    %v281 = vld [vmem:[#allocation8 + $0x78] sm:$0xff]
    %283 = vrot.lane.b32.xlu0 %v277, 96
    %v284 = vpop.permute.xlu0 %283
    %v285 = vperm.slane %v69, 3
    %v287 = vsel %vm74, %v284, 0
    %289 = vmatpush.msra.mxu0 0.0
    %290 = vmatpush.msra.mxu0 0.0
    %291 = vmatpush.msra.mxu0 0.0
    %292 = vmatpush.msra.mxu0 0.0
    %293 = vmatpush.msra.mxu0 0.0
    %294 = vmatpush.msra.mxu0 0.0
    %295 = vmatpush.msra.mxu0 0.0
    %296 = vmatpush.msra.mxu0 0.0
    %297 = vmatpush.msra.mxu0 0.0
    %298 = vmatpush.msra.mxu0 0.0
    %299 = vmatpush.msra.mxu0 0.0
    %300 = vmatpush.msra.mxu0 0.0
    %301 = vmatpush.msra.mxu0 %v281
    %302 = vmatpush.msra.mxu0 %v280
    %303 = vmatpush.msra.mxu0 %v279
    %304 = vmatpush.msra.mxu0 %v278
    %305 = vmatmul.f32.gmra.mxu0 %v287
    %v306 = vpop.f32.mrf.mxu0
    %v307 = vadd.f32 %v285, %v306
    %308 = vdwg.mxu0
    %309 = vst [vmem:[#allocation9] sm:$0x7] 0.0
    %310 = vst.msk [vmem:[#allocation9] sm:$0x1] %vm115, %v307
    %vm312 = vcmask 253952
    %313 = vst.msk [vmem:[#allocation9 + $0x1] sm:$0x1] %vm312, %v284
    %314 = vst.msk [vmem:[#allocation9 + $0x2] sm:$0x1] %vm115, %v139
    // Predicated region
    $region34: #{tpu_custom_call.1} parent=1 // pred_check
      _
    $region35: #{tpu_custom_call.1} parent=1 // pred_check_branch
      %316 = sbr.rel (0) target = $region37
    $region36: #{tpu_custom_call.1} parent=1 // pred_region
      %318 = vsyncadd [#allocation5], 0
      %s320 = sshll.u32 [#allocation9], 4
      %s321 = int_to_ptr.vmem [resolvable:$true] %s320
      %s322 = sshll.u32 %s5, 4
      %s323 = int_to_ptr.hbm [resolvable:$true] %s322
      %325 = dma.vmem_to_hbm [thread:$0]  %s321, 64, %s323, [#allocation5]
    $region37: #{tpu_custom_call.1} parent=1 // pred_fallthru
      _
    // Predicated region
    $region38: #{tpu_custom_call.1} parent=1 // pred_check
      _
    $region39: #{tpu_custom_call.1} parent=1 // pred_check_branch
      %327 = sbr.rel (0) target = $region41
    $region40: #{tpu_custom_call.1} parent=1 // pred_region
      %329 = dma.done [#allocation5], 64
    $region41: #{tpu_custom_call.1} parent=1 // pred_fallthru
      _
    %330 = vsyncpa [#allocation4], 1
    %331 = vsyncpa [#allocation7], 1
    %332 = vsyncpa [#allocation5], 1

</llo_original>
